<compile_context>
chip_gen: v6e
topology: v6e:2x2x1
jax: 0.10.0
libtpu: 0.0.40
codegen_flags: <defaults>
</compile_context>

<pallas_src>
import functools

import jax
import jax.numpy as jnp
import numpy as np
from jax.experimental import pallas as pl
from jax.experimental.pallas import tpu as pltpu


def _ldam_tile_kernel(x_ref, tgt_ref, m_ref, out_ref, *, s, n_valid, tile_n):
    i = pl.program_id(0)

    x = x_ref[...].astype(jnp.float32)      # [TN, C] cast-on-load (input may be bf16)
    tgt = tgt_ref[...]                      # [TN, 1] int32
    m = m_ref[...].astype(jnp.float32)      # [1, C]

    tn, c = x.shape
    col = jax.lax.broadcasted_iota(jnp.int32, (tn, c), 1)
    onehot = col == tgt                     # [TN, C] bool (scatter_ equivalent)

    if c >= 16:
        # m[target] as an MXU matmul (matches the reference's
        # torch.matmul(m_list[None, :], index_float.T)); keeps the XLU free
        # for the row-wise max / sum-exp reductions.
        onehot_f = onehot.astype(jnp.float32)
        batch_m = jnp.einsum("nc,kc->nk", onehot_f, m,
                             preferred_element_type=jnp.float32)          # [TN, 1]
    else:
        # Tiny class counts: the MXU buys nothing; plain select+reduce.
        batch_m = jnp.sum(jnp.where(onehot, m, 0.0), axis=1, keepdims=True)

    # x[target] via one fused select+reduce.
    x_tgt = jnp.sum(jnp.where(onehot, x, 0.0), axis=1, keepdims=True)     # [TN, 1]

    # output = where(index, x - batch_m, x); z = s * output
    z = s * jnp.where(onehot, x - batch_m, x)                             # [TN, C]

    # cross_entropy(z, target): per-sample NLL via max-stabilized logsumexp.
    z_max = jnp.max(z, axis=1, keepdims=True)
    lse = jnp.log(jnp.sum(jnp.exp(z - z_max), axis=1, keepdims=True)) + z_max
    z_tgt = s * (x_tgt - batch_m)           # == z[target], no extra [TN, C] reduce
    per_sample = lse - z_tgt                # [TN, 1]

    # Mask padded rows of the (possibly partial) last tile.  NOTE: keep this a
    # select (not a multiplicative mask); padded rows may hold garbage that
    # already flowed through exp/log.
    row = jax.lax.broadcasted_iota(jnp.int32, (tn, 1), 0) + i * tile_n
    per_sample = jnp.where(row < n_valid, per_sample, 0.0)

    # Lane-dense (8, 128) replicated partial-sum block (unmasked vst); the
    # wrapper sums everything densely and divides by 8*128*N.
    partial = jnp.sum(per_sample)
    out_ref[...] = jnp.full(out_ref.shape, partial, dtype=jnp.float32)


def _vmem_capacity_bytes(default_bytes=64 * 1024 * 1024):
    """Physical VMEM per TensorCore, with a conservative (v7x) fallback."""
    try:
        get_info = getattr(pltpu, "get_tpu_info", None)
        if get_info is not None:
            cap = int(getattr(get_info(), "vmem_capacity_bytes", 0))
            if cap > 0:
                return cap
    except Exception:
        pass
    return default_bytes


_MAX_TILE_ROWS = 2048  # ~HBM-roofline point; bigger tiles only add latency


def _pick_tile_n(n, c, in_itemsize, vmem_budget_bytes):
    """Rows per grid step.

    Per-row VMEM cost = double-buffered input tile (2 * C * itemsize) plus the
    live f32 [TN, C] intermediates of the body (x_f32, one-hot mask, z,
    exp(z - z_max), select temporaries: budgeted at 8 * C * 4), plus slack for
    the [TN, 1] columns.
    """
    if n <= 8:
        return n                                   # full-dim block
    c = max(c, 1)
    per_row = 2 * c * in_itemsize + 8 * c * 4 + 64
    budget_rows = max(8, vmem_budget_bytes // per_row)
    tn = min(_MAX_TILE_ROWS, n, budget_rows)
    return max(8, (tn // 8) * 8)


def _ldam_loss_reference(x, target, m_list, s):
    """Plain-JAX forward (fallback for tiny C; also the correctness oracle)."""
    x = x.astype(jnp.float32)
    C = x.shape[1]
    onehot = jax.nn.one_hot(target, C, dtype=jnp.float32)
    batch_m = jnp.sum(onehot * m_list.astype(jnp.float32)[None, :],
                      axis=1, keepdims=True)
    z = s * jnp.where(onehot > 0, x - batch_m, x)
    z_max = jnp.max(z, axis=1, keepdims=True)
    lse = jnp.log(jnp.sum(jnp.exp(z - z_max), axis=1, keepdims=True)) + z_max
    z_tgt = jnp.sum(z * onehot, axis=1, keepdims=True)
    return jnp.mean(lse - z_tgt)


def ldam_loss(x, target, m_list, s=30.0, *, downcast_to_bf16=True,
              use_pallas=None, tile_rows=None):
    """LDAMLoss.forward: x [N, C] logits, target [N] int class ids, m_list [C]."""
    N, C = x.shape

    if use_pallas is None:
        # Tiny class counts waste nearly all vreg lanes (utilization C/128);
        # XLA's fused elementwise path wins there.
        use_pallas = C >= 16

    if downcast_to_bf16 and x.dtype == jnp.float32:
        x = x.astype(jnp.bfloat16)   # halve HBM bytes; kernel computes in f32

    if not use_pallas:
        return _ldam_loss_reference(x, target, m_list, s)

    vmem_cap = _vmem_capacity_bytes()
    # ~48 MiB budget on v7x (64 MiB VMEM/TC), ~96 MiB on v5e/v6e (128 MiB/TC).
    vmem_budget = int(min((vmem_cap * 3) // 4, 96 * 1024 * 1024))

    if N <= 8:
        tn = N
    elif tile_rows is not None:
        tn = max(8, (min(int(tile_rows), N) // 8) * 8)
    else:
        tn = _pick_tile_n(N, C, x.dtype.itemsize, vmem_budget)
    num_tiles = -(-N // tn)

    tgt2d = target.reshape(N, 1).astype(jnp.int32)
    m2d = m_list.reshape(1, C).astype(jnp.float32)

    kernel = functools.partial(_ldam_tile_kernel, s=float(s), n_valid=N, tile_n=tn)

    try:
        cost = pl.CostEstimate(
            flops=int(12 * N * C),
            transcendentals=int(N * (C + 1)),
            bytes_accessed=int(N * C * x.dtype.itemsize + N * 4 + C * 4
                               + num_tiles * 8 * 128 * 4),
        )
    except Exception:  # advisory only
        cost = None

    partials = pl.pallas_call(
        kernel,
        out_shape=jax.ShapeDtypeStruct((num_tiles, 8, 128), jnp.float32),
        grid=(num_tiles,),
        in_specs=[
            pl.BlockSpec((tn, C), lambda i: (i, 0)),   # x tile (bf16 / native)
            pl.BlockSpec((tn, 1), lambda i: (i, 0)),   # target tile
            pl.BlockSpec((1, C), lambda i: (0, 0)),    # m_list (resident)
        ],
        out_specs=pl.BlockSpec((1, 8, 128), lambda i: (i, 0, 0)),
        compiler_params=pltpu.CompilerParams(
            dimension_semantics=("parallel",),
            vmem_limit_bytes=vmem_budget,
        ),
        cost_estimate=cost,
    )(x, tgt2d, m2d)

    # Every element of a partial block holds the same per-tile sum: one dense
    # sum (no strided [:, 0, 0] gather) plus a precomputed reciprocal gives the
    # batch mean.
    return jnp.sum(partials) * jnp.float32(1.0 / (N * 8 * 128))


def make_m_list(cls_num_list, max_m=0.5):
    m = 1.0 / np.sqrt(np.sqrt(np.asarray(cls_num_list, dtype=np.float64)))
    m = m * (max_m / np.max(m))
    return jnp.asarray(m, dtype=jnp.float32)


if __name__ == "__main__":
    key = jax.random.PRNGKey(0)
    kx, kt, kx2, kt2 = jax.random.split(key, 4)
    s = 30.0

    # --- Case 1: the module's own 2-class OOD configuration -----------------
    # cls_num_list = [outdata_size * n_out_datasets, indata_size]
    cls_num_list = [16, 8]
    m_list = make_m_list(cls_num_list, max_m=0.5)
    N, C = 8, len(cls_num_list)
    x = jax.random.normal(kx, (N, C), dtype=jnp.float32)
    target = jax.random.randint(kt, (N,), 0, C, dtype=jnp.int32)

    # Force the Pallas path (the wrapper would otherwise pick the plain-JAX
    # fallback for such a tiny class count).
    loss = ldam_loss(x, target, m_list, s=s, use_pallas=True)
    jax.block_until_ready(loss)
    ref = _ldam_loss_reference(x.astype(jnp.bfloat16), target, m_list, s)
    assert abs(float(loss) - float(ref)) < 1e-3, (float(loss), float(ref))

    # --- Case 2: lane-dense class count, multi-step grid + partial last tile -
    N2, C2 = 200, 128
    m_list2 = make_m_list(list(range(4, 4 + C2)), max_m=0.5)
    x2 = jax.random.normal(kx2, (N2, C2), dtype=jnp.float32)
    target2 = jax.random.randint(kt2, (N2,), 0, C2, dtype=jnp.int32)

    loss2 = ldam_loss(x2, target2, m_list2, s=s, use_pallas=True, tile_rows=64)
    jax.block_until_ready(loss2)
    ref2 = _ldam_loss_reference(x2.astype(jnp.bfloat16), target2, m_list2, s)
    assert abs(float(loss2) - float(ref2)) < 1e-3 * max(1.0, abs(float(ref2))), (
        float(loss2), float(ref2))

    print("KERNEL_OK")
</pallas_src>

<mosaic_0001>
module attributes {stable_mosaic.version = 11 : i64} {
  func.func @_ldam_tile_kernel(%arg0: i32, %arg1: memref<8x2xbf16, #tpu.memory_space<vmem>>, %arg2: memref<8x1xi32, #tpu.memory_space<vmem>>, %arg3: memref<1x2xf32, #tpu.memory_space<vmem>>, %arg4: memref<1x8x128xf32, #tpu.memory_space<vmem>>) attributes {dimension_semantics = [#tpu.dimension_semantics<parallel>], iteration_bounds = array<i64: 1>, scalar_prefetch = 0 : i64, scratch_operands = 0 : i64, tpu.core_type = #tpu.core_type<tc>, window_params = [{transform_indices = @transform_0, window_bounds = array<i64: 8, 2>}, {transform_indices = @transform_1, window_bounds = array<i64: 8, 1>}, {pipeline_mode = #tpu.pipeline_mode<synchronous>, transform_indices = @transform_2, window_bounds = array<i64: 1, 2>}, {transform_indices = @transform_3, window_bounds = array<i64: 1, 8, 128>}]} {
    %c0 = arith.constant 0 : index
    %c0_0 = arith.constant 0 : index
    %0 = vector.load %arg1[%c0, %c0_0] : memref<8x2xbf16, #tpu.memory_space<vmem>>, vector<8x2xbf16>
    %1 = arith.extf %0 : vector<8x2xbf16> to vector<8x2xf32>
    %c0_1 = arith.constant 0 : index
    %c0_2 = arith.constant 0 : index
    %2 = vector.load %arg2[%c0_1, %c0_2] : memref<8x1xi32, #tpu.memory_space<vmem>>, vector<8x1xi32>
    %c0_3 = arith.constant 0 : index
    %c0_4 = arith.constant 0 : index
    %3 = vector.load %arg3[%c0_3, %c0_4] : memref<1x2xf32, #tpu.memory_space<vmem>>, vector<1x2xf32>
    %4 = tpu.iota {dimensions = array<i32: 1>} : vector<8x2xi32>
    %5 = vector.broadcast %2 : vector<8x1xi32> to vector<8x2xi32>
    %6 = arith.cmpi eq, %4, %5 : vector<8x2xi32>
    %cst = arith.constant 0.000000e+00 : f32
    %7 = vector.shape_cast %3 : vector<1x2xf32> to vector<1x2xf32>
    %8 = vector.broadcast %7 : vector<1x2xf32> to vector<8x2xf32>
    %9 = vector.broadcast %cst : f32 to vector<8x2xf32>
    %10 = arith.select %6, %8, %9 : vector<8x2xi1>, vector<8x2xf32>
    %cst_5 = arith.constant dense<0.000000e+00> : vector<8xf32>
    %11 = vector.multi_reduction <add>, %10, %cst_5 [1] : vector<8x2xf32> to vector<8xf32>
    %12 = vector.shape_cast %11 : vector<8xf32> to vector<8x1xf32>
    %cst_6 = arith.constant 0.000000e+00 : f32
    %13 = vector.broadcast %cst_6 : f32 to vector<8x2xf32>
    %14 = arith.select %6, %1, %13 : vector<8x2xi1>, vector<8x2xf32>
    %cst_7 = arith.constant dense<0.000000e+00> : vector<8xf32>
    %15 = vector.multi_reduction <add>, %14, %cst_7 [1] : vector<8x2xf32> to vector<8xf32>
    %16 = vector.shape_cast %15 : vector<8xf32> to vector<8x1xf32>
    %17 = vector.broadcast %12 : vector<8x1xf32> to vector<8x2xf32>
    %18 = arith.subf %1, %17 : vector<8x2xf32>
    %19 = arith.select %6, %18, %1 : vector<8x2xi1>, vector<8x2xf32>
    %cst_8 = arith.constant 3.000000e+01 : f32
    %20 = vector.broadcast %cst_8 : f32 to vector<8x2xf32>
    %21 = arith.mulf %20, %19 : vector<8x2xf32>
    %cst_9 = arith.constant dense<0xFF800000> : vector<8xf32>
    %22 = vector.multi_reduction <maximumf>, %21, %cst_9 [1] : vector<8x2xf32> to vector<8xf32>
    %23 = vector.shape_cast %22 : vector<8xf32> to vector<8x1xf32>
    %24 = vector.broadcast %23 : vector<8x1xf32> to vector<8x2xf32>
    %25 = arith.subf %21, %24 : vector<8x2xf32>
    %26 = math.exp %25 : vector<8x2xf32>
    %cst_10 = arith.constant dense<0.000000e+00> : vector<8xf32>
    %27 = vector.multi_reduction <add>, %26, %cst_10 [1] : vector<8x2xf32> to vector<8xf32>
    %28 = vector.shape_cast %27 : vector<8xf32> to vector<8x1xf32>
    %29 = math.log %28 : vector<8x1xf32>
    %30 = arith.addf %29, %23 : vector<8x1xf32>
    %31 = arith.subf %16, %12 : vector<8x1xf32>
    %cst_11 = arith.constant 3.000000e+01 : f32
    %32 = vector.broadcast %cst_11 : f32 to vector<8x1xf32>
    %33 = arith.mulf %32, %31 : vector<8x1xf32>
    %34 = arith.subf %30, %33 : vector<8x1xf32>
    %35 = tpu.iota {dimensions = array<i32: 0>} : vector<8x1xi32>
    %c8_i32 = arith.constant 8 : i32
    %36 = arith.muli %arg0, %c8_i32 : i32
    %37 = vector.broadcast %36 : i32 to vector<8x1xi32>
    %38 = arith.addi %35, %37 : vector<8x1xi32>
    %c8_i32_12 = arith.constant 8 : i32
    %39 = vector.broadcast %c8_i32_12 : i32 to vector<8x1xi32>
    %40 = arith.cmpi slt, %38, %39 : vector<8x1xi32>
    %cst_13 = arith.constant 0.000000e+00 : f32
    %41 = vector.broadcast %cst_13 : f32 to vector<8x1xf32>
    %42 = arith.select %40, %34, %41 : vector<8x1xi1>, vector<8x1xf32>
    %43 = vector.shape_cast %42 : vector<8x1xf32> to vector<1x8x1xf32>
    %cst_14 = arith.constant dense<0.000000e+00> : vector<1xf32>
    %44 = vector.multi_reduction <add>, %43, %cst_14 [1, 2] : vector<1x8x1xf32> to vector<1xf32>
    %45 = vector.shape_cast %44 : vector<1xf32> to vector<1x1x1xf32>
    %46 = vector.extract %45[0, 0, 0] : f32 from vector<1x1x1xf32>
    %47 = vector.broadcast %46 : f32 to vector<1x8x128xf32>
    %c0_15 = arith.constant 0 : index
    %c0_16 = arith.constant 0 : index
    %c0_17 = arith.constant 0 : index
    %48 = vector.load %arg4[%c0_15, %c0_16, %c0_17] : memref<1x8x128xf32, #tpu.memory_space<vmem>>, vector<1x8x128xf32>
    tpu.vector_store %arg4[%c0_15, %c0_16, %c0_17], %47 {strides = array<i32>} : memref<1x8x128xf32, #tpu.memory_space<vmem>>, vector<1x8x128xf32>,
    return
  }
  func.func @transform_0(%arg0: i32) -> (i32, i32) {
    %c0_i32 = arith.constant 0 : i32
    %c0_i32_0 = arith.constant 0 : i32
    return %arg0, %c0_i32 : i32, i32
  }
  func.func @transform_1(%arg0: i32) -> (i32, i32) {
    %c0_i32 = arith.constant 0 : i32
    %c0_i32_0 = arith.constant 0 : i32
    return %arg0, %c0_i32 : i32, i32
  }
  func.func @transform_2(%arg0: i32) -> (i32, i32) {
    %c0_i32 = arith.constant 0 : i32
    %c0_i32_0 = arith.constant 0 : i32
    %c0_i32_1 = arith.constant 0 : i32
    return %c0_i32, %c0_i32_0 : i32, i32
  }
  func.func @transform_3(%arg0: i32) -> (i32, i32, i32) {
    %c0_i32 = arith.constant 0 : i32
    %c0_i32_0 = arith.constant 0 : i32
    %c0_i32_1 = arith.constant 0 : i32
    return %arg0, %c0_i32, %c0_i32_0 : i32, i32, i32
  }
}

</mosaic_0001>

<llo_original>
// kernel: tpu_custom_call.1
$region0: #{tpu_custom_call.1}
  #allocation0 [shape = 'u32[]', space=smem, size = 0x4, offset = 0x4, fixed_abs, tag = 'smem constant byte address 0x4 - core index']
  #allocation1 [shape = 'u32[144,128]{1,0:T(1,128)}', space=vmem, size = 0x12000, scoped, tag = 'internal scratch']
  %s0 = inlined_call_operand.vmem [shape: bf16[8,2], index: 0, kind: input, shape index: {}]
  %s1 = inlined_call_operand.vmem [shape: s32[8,1], index: 1, kind: input, shape index: {}]
  %s2 = inlined_call_operand.vmem [shape: f32[1,2], index: 2, kind: input, shape index: {}]
  %s3 = inlined_call_operand.hbm [shape: f32[1,8,128], index: 3, kind: output, shape index: {}]
  %s4 = sld [smem:[#allocation0]]
  $region22: #{tpu_custom_call.1} parent=0
    _
  %s6 = ssub.s32 1, %s4
  %s7 = scalar_select 0, %s6, %s4
  $region1: #{tpu_custom_call.1} parent=0
    #allocation2 [shape = 'u8[4096]{0}', space=vmem, size = 0x1000, scoped, tag = 'output window, operand 0, single buffered']
    #allocation3 [shape = 's32[1]{0}', space=sflag, size = 0x4, scoped, tag = 'scoped memory for tpu_custom_call.1']
    %8 = vsyncpa [#allocation3], 0
    // Predicated region
    $region2: #{tpu_custom_call.1} parent=1 // pred_check
      _
    $region3: #{tpu_custom_call.1} parent=1 // pred_check_branch
      %10 = sbr.rel (0) target = $region5
    $region4: #{tpu_custom_call.1} parent=1 // pred_region
      _
    $region5: #{tpu_custom_call.1} parent=1 // pred_fallthru
      _
    // Predicated region
    $region6: #{tpu_custom_call.1} parent=1 // pred_check
      _
    $region7: #{tpu_custom_call.1} parent=1 // pred_check_branch
      %12 = sbr.rel (0) target = $region9
    $region8: #{tpu_custom_call.1} parent=1 // pred_region
      _
    $region9: #{tpu_custom_call.1} parent=1 // pred_fallthru
      _
    // Predicated region
    $region10: #{tpu_custom_call.1} parent=1 // pred_check
      _
    $region11: #{tpu_custom_call.1} parent=1 // pred_check_branch
      %14 = sbr.rel (0) target = $region13
    $region12: #{tpu_custom_call.1} parent=1 // pred_region
      _
    $region13: #{tpu_custom_call.1} parent=1 // pred_fallthru
      _
    %v15 = vld [vmem:[%s0] sm:$0xf]
    %v16 = vunpack.c.l.bf16 %v15
    %v17 = vld [vmem:[%s1] sm:$0xff]
    %v18 = vld [vmem:[%s2] sm:$0x1]
    %v19 = vlaneseq
    %v20 = vand.u32 %v19, 127
    %21 = vset.pattern.permute.xlu0 0
    %22 = vperm.xlu0 %21, %v17
    %v23 = vpop.permute.xlu0 %22
    %vm24 = vcmp.eq.s32.totalorder %v20, %v23
    %v26 = vlaneseq
    %v27 = vshrl.u32 %v26, 7
    %v28 = vsub.s32 0, %v27
    %v29 = vrot.slane %v18, %v28
    %v31 = vsel %vm24, %v29, 0.0
    %vm32 = vcmask 15360
    %v33 = vsel %vm32, %v31, 0.0
    %34 = vadd.xlane.f32.xlu0 %v33
    %v35 = vpop.xlane.xlu0 %34
    %v36 = vsel %vm24, %v16, 0.0
    %v37 = vsel %vm32, %v36, 0.0
    %38 = vadd.xlane.f32.xlu0 %v37
    %v39 = vpop.xlane.xlu0 %38
    %v40 = vsub.f32 %v16, %v35
    %v41 = vsel %vm24, %v40, %v16
    %v42 = vmul.f32 %v41, 30.0
    %v43 = vsel %vm32, %v42, -inf
    %44 = vmax.xlane.f32.xlu0 %v43
    %v45 = vpop.xlane.xlu0 %44
    %v46 = vsub.f32 %v42, %v45
    %v47 = vmul.f32 %v46, 1.442695
    %v48 = vpow.pop %v47
    %v49 = vsel %vm32, %v48, 0.0
    %50 = vadd.xlane.f32.xlu0 %v49
    %v51 = vpop.xlane.xlu0 %50
    %v52 = vlog2.pop %v51
    %v53 = vmul.f32 %v52, 0.6931472
    %v54 = vadd.f32 %v53, %v45
    %v55 = vsub.f32 %v39, %v35
    %v56 = vmul.f32 %v55, 30.0
    %v57 = vsub.f32 %v54, %v56
    %v58 = vlaneseq
    %v59 = vshrl.u32 %v58, 7
    %s60 = smul.u32 0, 8
    %v61 = vstv %s60
    %v62 = vadd.s32 %v59, %v61
    %vm63 = vcmp.lt.s32.totalorder %v62, 8
    %v64 = vsel %vm63, %v57, 0.0
    %vm65 = vcmask 7168
    %v66 = vsel %vm65, %v64, 0.0
    %67 = vadd.xlane.f32.xlu0 %v66
    %v68 = vpop.xlane.xlu0 %67
    %v69 = vrot.slane %v68, 4
    %v70 = vadd.f32 %v68, %v69
    %v71 = vrot.slane %v70, 2
    %v72 = vadd.f32 %v70, %v71
    %v73 = vrot.slane %v72, 1
    %v74 = vadd.f32 %v72, %v73
    %s75 = vtos %v74
    %v76 = vstv %s75
    %77 = vst [vmem:[#allocation2] sm:$0xff] %v76
    // Predicated region
    $region14: #{tpu_custom_call.1} parent=1 // pred_check
      _
    $region15: #{tpu_custom_call.1} parent=1 // pred_check_branch
      %79 = sbr.rel (0) target = $region17
    $region16: #{tpu_custom_call.1} parent=1 // pred_region
      %s81 = ssub.s32 128, 128
      %82 = vsyncadd [#allocation3], %s81
      %s84 = sshll.u32 [#allocation2], 4
      %s85 = int_to_ptr.vmem [resolvable:$true] %s84
      %87 = dma.vmem_to_hbm [thread:$0]  %s85, 128, %s3, [#allocation3]
    $region17: #{tpu_custom_call.1} parent=1 // pred_fallthru
      _
    // Predicated region
    $region18: #{tpu_custom_call.1} parent=1 // pred_check
      _
    $region19: #{tpu_custom_call.1} parent=1 // pred_check_branch
      %89 = sbr.rel (0) target = $region21
    $region20: #{tpu_custom_call.1} parent=1 // pred_region
      %90 = dma.done [#allocation3], 128
    $region21: #{tpu_custom_call.1} parent=1 // pred_fallthru
      _
    %91 = vsyncpa [#allocation3], 1

</llo_original>
